<compile_context>
chip_gen: v5e
topology: v5e:2x2
jax: 0.10.0
libtpu: 0.0.40
codegen_flags: <defaults>
</compile_context>

<pallas_src>
import jax
import jax.numpy as jnp
from jax.experimental import pallas as pl
from jax.experimental.pallas import tpu as pltpu

# Logical layer sizes (from the PyTorch module) and lane-padded sizes.
L1, L2 = 400, 200
L1_PAD, L2_PAD = 512, 256
OUT_PAD = 128


def critic_kernel(x_ref,
                  w1_ref, b1_ref,
                  w2_ref, b2_ref,
                  w3_ref, b3_ref,
                  out_ref):
    x = x_ref[...]

    # input_layer + ReLU  (bf16 weights -> f32, f32 accumulate)
    w1 = w1_ref[...].astype(jnp.float32)
    h1 = jnp.dot(x, w1, preferred_element_type=jnp.float32) + b1_ref[...]
    h1 = jnp.maximum(h1, 0.0)

    # hidden_layer + ReLU
    w2 = w2_ref[...].astype(jnp.float32)
    h2 = jnp.dot(h1, w2, preferred_element_type=jnp.float32) + b2_ref[...]
    h2 = jnp.maximum(h2, 0.0)

    # output_layer (no activation) -> single lane-dense (B, 128) store
    w3 = w3_ref[...].astype(jnp.float32)
    out_ref[...] = jnp.dot(h2, w3, preferred_element_type=jnp.float32) + b3_ref[...]


def critic_forward(x, packed, out_size):
    """x: (B, inputSize) f32; packed: tuple of padded bf16 weights / f32 biases."""
    B, in_size = x.shape
    n_in = 1 + len(packed)

    flops = 2 * B * (in_size * L1_PAD + L1_PAD * L2_PAD + L2_PAD * OUT_PAD)
    bytes_accessed = (x.size * 4
                      + sum(int(a.size) * a.dtype.itemsize for a in packed)
                      + B * OUT_PAD * 4)

    out_padded = pl.pallas_call(
        critic_kernel,
        out_shape=jax.ShapeDtypeStruct((B, OUT_PAD), jnp.float32),
        in_specs=[pl.BlockSpec(memory_space=pltpu.MemorySpace.VMEM)] * n_in,
        out_specs=pl.BlockSpec(memory_space=pltpu.MemorySpace.VMEM),
        cost_estimate=pl.CostEstimate(flops=flops,
                                      transcendentals=0,
                                      bytes_accessed=bytes_accessed),
    )(x, *packed)
    return out_padded[:, :out_size]


def init_params(key, input_size, output_size):
    """Deterministic init mirroring nn.Linear's U(-1/sqrt(fan_in), 1/sqrt(fan_in)).

    Weights stored transposed as (in_features, out_features) so y = x @ W + b.
    """
    def linear(key, fan_in, fan_out):
        kw, kb = jax.random.split(key)
        bound = 1.0 / jnp.sqrt(jnp.float32(fan_in))
        w = jax.random.uniform(kw, (fan_in, fan_out), jnp.float32, -bound, bound)
        b = jax.random.uniform(kb, (1, fan_out), jnp.float32, -bound, bound)
        return w, b

    keys = jax.random.split(key, 3)
    w1, b1 = linear(keys[0], input_size, L1)
    w2, b2 = linear(keys[1], L1, L2)
    w3, b3 = linear(keys[2], L2, output_size)
    return dict(w1=w1, b1=b1, w2=w2, b2=b2, w3=w3, b3=b3)


def pack_params(p):
    """Zero-pad to lane-multiple shapes; weights -> bf16 (HBM bytes), biases f32."""
    def pad(a, rows, cols):
        return jnp.zeros((rows, cols), a.dtype).at[:a.shape[0], :a.shape[1]].set(a)

    in_size = p["w1"].shape[0]
    w1 = pad(p["w1"], in_size, L1_PAD).astype(jnp.bfloat16)
    b1 = pad(p["b1"], 1, L1_PAD)
    w2 = pad(p["w2"], L1_PAD, L2_PAD).astype(jnp.bfloat16)
    b2 = pad(p["b2"], 1, L2_PAD)
    w3 = pad(p["w3"], L2_PAD, OUT_PAD).astype(jnp.bfloat16)
    b3 = pad(p["b3"], 1, OUT_PAD)
    return (w1, b1, w2, b2, w3, b3)


def reference_forward(x, p):
    """Pure-JAX reference using the same bf16-rounded weights, f32 accumulation."""
    hi = jax.lax.Precision.HIGHEST

    def q(w):
        return w.astype(jnp.bfloat16).astype(jnp.float32)

    h1 = jnp.maximum(jnp.dot(x, q(p["w1"]), precision=hi) + p["b1"], 0.0)
    h2 = jnp.maximum(jnp.dot(h1, q(p["w2"]), precision=hi) + p["b2"], 0.0)
    return jnp.dot(h2, q(p["w3"]), precision=hi) + p["b3"]


if __name__ == "__main__":
    key = jax.random.PRNGKey(0)
    k_x, k_p = jax.random.split(key)

    batch = 8
    input_size = 8      # e.g. LunarLanderContinuous state dim
    output_size = 1     # critic emits a scalar value per state

    x = jax.random.normal(k_x, (batch, input_size), jnp.float32)
    params = init_params(k_p, input_size, output_size)
    packed = pack_params(params)

    value = critic_forward(x, packed, output_size)
    jax.block_until_ready(value)

    ref = reference_forward(x, params)
    assert value.shape == (batch, output_size)
    assert jnp.allclose(value, ref, atol=1e-4, rtol=1e-4)

    print("KERNEL_OK")
</pallas_src>

<mosaic_0001>
module attributes {stable_mosaic.version = 11 : i64} {
  func.func @critic_kernel(%arg0: memref<8x8xf32, #tpu.memory_space<vmem>>, %arg1: memref<8x512xbf16, #tpu.memory_space<vmem>>, %arg2: memref<1x512xf32, #tpu.memory_space<vmem>>, %arg3: memref<512x256xbf16, #tpu.memory_space<vmem>>, %arg4: memref<1x256xf32, #tpu.memory_space<vmem>>, %arg5: memref<256x128xbf16, #tpu.memory_space<vmem>>, %arg6: memref<1x128xf32, #tpu.memory_space<vmem>>, %arg7: memref<8x128xf32, #tpu.memory_space<vmem>>) attributes {dimension_semantics = [], scalar_prefetch = 0 : i64, scratch_operands = 0 : i64, tpu.core_type = #tpu.core_type<tc>} {
    %c0 = arith.constant 0 : index
    %c0_0 = arith.constant 0 : index
    %0 = vector.load %arg0[%c0, %c0_0] : memref<8x8xf32, #tpu.memory_space<vmem>>, vector<8x8xf32>
    %c0_1 = arith.constant 0 : index
    %c0_2 = arith.constant 0 : index
    %1 = vector.load %arg1[%c0_1, %c0_2] : memref<8x512xbf16, #tpu.memory_space<vmem>>, vector<8x512xbf16>
    %2 = arith.extf %1 : vector<8x512xbf16> to vector<8x512xf32>
    %cst = arith.constant dense<0.000000e+00> : vector<8x512xf32>
    %3 = tpu.matmul %0, %2, %cst {dimension_numbers = #tpu.dot_dimension_numbers<[1], [0], [0], [1], [0, 0, 1, 1], [], []>} : vector<8x8xf32>, vector<8x512xf32>, vector<8x512xf32> -> vector<8x512xf32>
    %c0_3 = arith.constant 0 : index
    %c0_4 = arith.constant 0 : index
    %4 = vector.load %arg2[%c0_3, %c0_4] : memref<1x512xf32, #tpu.memory_space<vmem>>, vector<1x512xf32>
    %5 = vector.broadcast %4 : vector<1x512xf32> to vector<8x512xf32>
    %6 = arith.addf %3, %5 : vector<8x512xf32>
    %cst_5 = arith.constant 0.000000e+00 : f32
    %7 = vector.broadcast %cst_5 : f32 to vector<8x512xf32>
    %8 = arith.maximumf %6, %7 : vector<8x512xf32>
    %c0_6 = arith.constant 0 : index
    %c0_7 = arith.constant 0 : index
    %9 = vector.load %arg3[%c0_6, %c0_7] : memref<512x256xbf16, #tpu.memory_space<vmem>>, vector<512x256xbf16>
    %10 = arith.extf %9 : vector<512x256xbf16> to vector<512x256xf32>
    %cst_8 = arith.constant dense<0.000000e+00> : vector<8x256xf32>
    %11 = tpu.matmul %8, %10, %cst_8 {dimension_numbers = #tpu.dot_dimension_numbers<[1], [0], [0], [1], [0, 0, 1, 1], [], []>} : vector<8x512xf32>, vector<512x256xf32>, vector<8x256xf32> -> vector<8x256xf32>
    %c0_9 = arith.constant 0 : index
    %c0_10 = arith.constant 0 : index
    %12 = vector.load %arg4[%c0_9, %c0_10] : memref<1x256xf32, #tpu.memory_space<vmem>>, vector<1x256xf32>
    %13 = vector.broadcast %12 : vector<1x256xf32> to vector<8x256xf32>
    %14 = arith.addf %11, %13 : vector<8x256xf32>
    %cst_11 = arith.constant 0.000000e+00 : f32
    %15 = vector.broadcast %cst_11 : f32 to vector<8x256xf32>
    %16 = arith.maximumf %14, %15 : vector<8x256xf32>
    %c0_12 = arith.constant 0 : index
    %c0_13 = arith.constant 0 : index
    %17 = vector.load %arg5[%c0_12, %c0_13] : memref<256x128xbf16, #tpu.memory_space<vmem>>, vector<256x128xbf16>
    %18 = arith.extf %17 : vector<256x128xbf16> to vector<256x128xf32>
    %cst_14 = arith.constant dense<0.000000e+00> : vector<8x128xf32>
    %19 = tpu.matmul %16, %18, %cst_14 {dimension_numbers = #tpu.dot_dimension_numbers<[1], [0], [0], [1], [0, 0, 1, 1], [], []>} : vector<8x256xf32>, vector<256x128xf32>, vector<8x128xf32> -> vector<8x128xf32>
    %c0_15 = arith.constant 0 : index
    %c0_16 = arith.constant 0 : index
    %20 = vector.load %arg6[%c0_15, %c0_16] : memref<1x128xf32, #tpu.memory_space<vmem>>, vector<1x128xf32>
    %21 = vector.broadcast %20 : vector<1x128xf32> to vector<8x128xf32>
    %22 = arith.addf %19, %21 : vector<8x128xf32>
    %c0_17 = arith.constant 0 : index
    %c0_18 = arith.constant 0 : index
    %23 = vector.load %arg7[%c0_17, %c0_18] : memref<8x128xf32, #tpu.memory_space<vmem>>, vector<8x128xf32>
    tpu.vector_store %arg7[%c0_17, %c0_18], %22 {strides = array<i32>} : memref<8x128xf32, #tpu.memory_space<vmem>>, vector<8x128xf32>,
    return
  }
}

</mosaic_0001>

<llo_original>
// kernel: tpu_custom_call.1
$region0: #{tpu_custom_call.1}
  #allocation0 [shape = 'u32[]', space=smem, size = 0x4, offset = 0x4, fixed_abs, tag = 'smem constant byte address 0x4 - core index']
  #allocation1 [shape = 'u32[72,128]{1,0:T(1,128)}', space=vmem, size = 0x9000, scoped, tag = 'internal scratch']
  %s0 = inlined_call_operand.hbm [shape: f32[8,8], index: 0, kind: input, shape index: {}]
  %s1 = inlined_call_operand.hbm [shape: bf16[8,512], index: 1, kind: input, shape index: {}]
  %s2 = inlined_call_operand.hbm [shape: f32[1,512], index: 2, kind: input, shape index: {}]
  %s3 = inlined_call_operand.hbm [shape: bf16[512,256], index: 3, kind: input, shape index: {}]
  %s4 = inlined_call_operand.vmem [shape: f32[1,256], index: 4, kind: input, shape index: {}]
  %s5 = inlined_call_operand.hbm [shape: bf16[256,128], index: 5, kind: input, shape index: {}]
  %s6 = inlined_call_operand.vmem [shape: f32[1,128], index: 6, kind: input, shape index: {}]
  %s7 = inlined_call_operand.hbm [shape: f32[8,128], index: 7, kind: output, shape index: {}]
  %s8 = sld [smem:[#allocation0]]
  $region58: #{tpu_custom_call.1} parent=0
    _
  %s10 = ssub.s32 1, %s8
  %s11 = scalar_select 0, %s10, %s8
  $region1: #{tpu_custom_call.1} parent=0
    #allocation2 [shape = 'u8[4096]{0}', space=vmem, size = 0x1000, scoped, tag = 'input window, operand 0, single buffered']
    #allocation3 [shape = 's32[1]{0}', space=sflag, size = 0x4, scoped, tag = 'scoped memory for tpu_custom_call.1']
    #allocation4 [shape = 's32[1]{0}', space=sflag, size = 0x4, scoped, tag = 'scoped memory for tpu_custom_call.1']
    #allocation5 [shape = 'u8[8192]{0}', space=vmem, size = 0x2000, scoped, tag = 'input window, operand 1, single buffered']
    #allocation6 [shape = 's32[1]{0}', space=sflag, size = 0x4, scoped, tag = 'scoped memory for tpu_custom_call.1']
    #allocation7 [shape = 'u8[2048]{0}', space=vmem, size = 0x800, scoped, tag = 'input window, operand 2, single buffered']
    #allocation8 [shape = 'u8[262144]{0}', space=vmem, size = 0x40000, scoped, tag = 'input window, operand 3, single buffered']
    #allocation9 [shape = 's32[1]{0}', space=sflag, size = 0x4, scoped, tag = 'scoped memory for tpu_custom_call.1']
    #allocation10 [shape = 'u8[65536]{0}', space=vmem, size = 0x10000, scoped, tag = 'input window, operand 5, single buffered']
    #allocation11 [shape = 'u8[4096]{0}', space=vmem, size = 0x1000, scoped, tag = 'output window, operand 0, single buffered']
    %12 = vsyncpa [#allocation3], 0
    %13 = vsyncpa [#allocation6], 0
    %14 = vsyncpa [#allocation9], 0
    %15 = vsyncpa [#allocation4], 0
    // Predicated region
    $region2: #{tpu_custom_call.1} parent=1 // pred_check
      _
    $region3: #{tpu_custom_call.1} parent=1 // pred_check_branch
      %17 = sbr.rel (0) target = $region5
    $region4: #{tpu_custom_call.1} parent=1 // pred_region
      %19 = vsyncadd [#allocation3], 0
      %s21 = sshll.u32 %s0, 4
      %s22 = int_to_ptr.hbm [resolvable:$true] %s21
      %s23 = sshll.u32 [#allocation2], 4
      %s24 = int_to_ptr.vmem [resolvable:$true] %s23
      %26 = dma.hbm_to_vmem [thread:$0]  %s22, 128, %s24, [#allocation3]
    $region5: #{tpu_custom_call.1} parent=1 // pred_fallthru
      _
    // Predicated region
    $region6: #{tpu_custom_call.1} parent=1 // pred_check
      _
    $region7: #{tpu_custom_call.1} parent=1 // pred_check_branch
      %28 = sbr.rel (0) target = $region9
    $region8: #{tpu_custom_call.1} parent=1 // pred_region
      %30 = vsyncadd [#allocation6], 0
      %s32 = sshll.u32 %s1, 4
      %s33 = int_to_ptr.hbm [resolvable:$true] %s32
      %s34 = sshll.u32 [#allocation5], 4
      %s35 = int_to_ptr.vmem [resolvable:$true] %s34
      %37 = dma.hbm_to_vmem [thread:$0]  %s33, 256, %s35, [#allocation6]
    $region9: #{tpu_custom_call.1} parent=1 // pred_fallthru
      _
    // Predicated region
    $region10: #{tpu_custom_call.1} parent=1 // pred_check
      _
    $region11: #{tpu_custom_call.1} parent=1 // pred_check_branch
      %39 = sbr.rel (0) target = $region13
    $region12: #{tpu_custom_call.1} parent=1 // pred_region
      %41 = vsyncadd [#allocation6], 0
      %s43 = sshll.u32 %s2, 4
      %s44 = int_to_ptr.hbm [resolvable:$true] %s43
      %s45 = sshll.u32 [#allocation7], 4
      %s46 = int_to_ptr.vmem [resolvable:$true] %s45
      %48 = dma.hbm_to_vmem [thread:$0]  %s44, 64, %s46, [#allocation6]
    $region13: #{tpu_custom_call.1} parent=1 // pred_fallthru
      _
    // Predicated region
    $region14: #{tpu_custom_call.1} parent=1 // pred_check
      _
    $region15: #{tpu_custom_call.1} parent=1 // pred_check_branch
      %50 = sbr.rel (0) target = $region17
    $region16: #{tpu_custom_call.1} parent=1 // pred_region
      %52 = vsyncadd [#allocation9], 0
      %s53 = sshll.u32 %s3, 4
      %s54 = int_to_ptr.hbm [resolvable:$true] %s53
      %s55 = sshll.u32 [#allocation8], 4
      %s56 = int_to_ptr.vmem [resolvable:$true] %s55
      %61 = dma.hbm_to_vmem [thread:$0]  %s54, 8192, %s56, [#allocation9], 128, 128, 8
    $region17: #{tpu_custom_call.1} parent=1 // pred_fallthru
      _
    // Predicated region
    $region18: #{tpu_custom_call.1} parent=1 // pred_check
      _
    $region19: #{tpu_custom_call.1} parent=1 // pred_check_branch
      %63 = sbr.rel (0) target = $region21
    $region20: #{tpu_custom_call.1} parent=1 // pred_region
      _
    $region21: #{tpu_custom_call.1} parent=1 // pred_fallthru
      _
    // Predicated region
    $region22: #{tpu_custom_call.1} parent=1 // pred_check
      _
    $region23: #{tpu_custom_call.1} parent=1 // pred_check_branch
      %65 = sbr.rel (0) target = $region25
    $region24: #{tpu_custom_call.1} parent=1 // pred_region
      %67 = vsyncadd [#allocation9], 0
      %s68 = sshll.u32 %s5, 4
      %s69 = int_to_ptr.hbm [resolvable:$true] %s68
      %s70 = sshll.u32 [#allocation10], 4
      %s71 = int_to_ptr.vmem [resolvable:$true] %s70
      %76 = dma.hbm_to_vmem [thread:$0]  %s69, 2048, %s71, [#allocation9], 64, 64, 4
    $region25: #{tpu_custom_call.1} parent=1 // pred_fallthru
      _
    // Predicated region
    $region26: #{tpu_custom_call.1} parent=1 // pred_check
      _
    $region27: #{tpu_custom_call.1} parent=1 // pred_check_branch
      %78 = sbr.rel (0) target = $region29
    $region28: #{tpu_custom_call.1} parent=1 // pred_region
      _
    $region29: #{tpu_custom_call.1} parent=1 // pred_fallthru
      _
    // Predicated region
    $region30: #{tpu_custom_call.1} parent=1 // pred_check
      _
    $region31: #{tpu_custom_call.1} parent=1 // pred_check_branch
      %80 = sbr.rel (0) target = $region33
    $region32: #{tpu_custom_call.1} parent=1 // pred_region
      %82 = dma.done [#allocation3], 128
    $region33: #{tpu_custom_call.1} parent=1 // pred_fallthru
      _
    // Predicated region
    $region34: #{tpu_custom_call.1} parent=1 // pred_check
      _
    $region35: #{tpu_custom_call.1} parent=1 // pred_check_branch
      %84 = sbr.rel (0) target = $region37
    $region36: #{tpu_custom_call.1} parent=1 // pred_region
      %86 = dma.done [#allocation6], 256
    $region37: #{tpu_custom_call.1} parent=1 // pred_fallthru
      _
    // Predicated region
    $region38: #{tpu_custom_call.1} parent=1 // pred_check
      _
    $region39: #{tpu_custom_call.1} parent=1 // pred_check_branch
      %88 = sbr.rel (0) target = $region41
    $region40: #{tpu_custom_call.1} parent=1 // pred_region
      %90 = dma.done [#allocation6], 64
    $region41: #{tpu_custom_call.1} parent=1 // pred_fallthru
      _
    // Predicated region
    $region42: #{tpu_custom_call.1} parent=1 // pred_check
      _
    $region43: #{tpu_custom_call.1} parent=1 // pred_check_branch
      %92 = sbr.rel (0) target = $region45
    $region44: #{tpu_custom_call.1} parent=1 // pred_region
      %94 = dma.done [#allocation9], 8192
    $region45: #{tpu_custom_call.1} parent=1 // pred_fallthru
      _
    // Predicated region
    $region46: #{tpu_custom_call.1} parent=1 // pred_check
      _
    $region47: #{tpu_custom_call.1} parent=1 // pred_check_branch
      %96 = sbr.rel (0) target = $region49
    $region48: #{tpu_custom_call.1} parent=1 // pred_region
      %98 = dma.done [#allocation9], 2048
    $region49: #{tpu_custom_call.1} parent=1 // pred_fallthru
      _
    %v99 = vld [vmem:[#allocation2] sm:$0xff]
    %v100 = vld [vmem:[#allocation5] sm:$0xff]
    %v101 = vld [vmem:[#allocation5 + $0x8] sm:$0xff]
    %v102 = vunpack.c.l.bf16 %v100
    %v103 = vunpack.c.h.bf16 %v100
    %v104 = vunpack.c.l.bf16 %v101
    %v105 = vunpack.c.h.bf16 %v101
    %v106 = vld [vmem:[#allocation7] sm:$0xf]
    %v108 = vperm.slane %v106, 0
    %v109 = vperm.slane %v106, 1
    %v110 = vperm.slane %v106, 2
    %v111 = vperm.slane %v106, 3
    %vm116 = vcmask 64512
    %v118 = vsel %vm116, %v99, 0
    %120 = vmatpush.msra.mxu0 0.0
    %121 = vmatpush.msra.mxu0 0.0
    %122 = vmatpush.msra.mxu0 0.0
    %123 = vmatpush.msra.mxu0 0.0
    %124 = vmatpush.msra.mxu0 0.0
    %125 = vmatpush.msra.mxu0 0.0
    %126 = vmatpush.msra.mxu0 0.0
    %127 = vmatpush.msra.mxu0 0.0
    %128 = vmatpush.msra.mxu0 0.0
    %129 = vmatpush.msra.mxu0 0.0
    %130 = vmatpush.msra.mxu0 0.0
    %131 = vmatpush.msra.mxu0 0.0
    %132 = vmatpush.msra.mxu0 0.0
    %133 = vmatpush.msra.mxu0 0.0
    %134 = vmatpush.msra.mxu0 0.0
    %135 = vmatpush.msra.mxu0 %v102
    %136 = vmatmul.f32.gmra.mxu0 %v118
    %v137 = vpop.f32.mrf.mxu0
    %v138 = vadd.f32 %v108, %v137
    %139 = vdwg.mxu0
    %140 = vmatpush.msra.mxu0 0.0
    %141 = vmatpush.msra.mxu0 0.0
    %142 = vmatpush.msra.mxu0 0.0
    %143 = vmatpush.msra.mxu0 0.0
    %144 = vmatpush.msra.mxu0 0.0
    %145 = vmatpush.msra.mxu0 0.0
    %146 = vmatpush.msra.mxu0 0.0
    %147 = vmatpush.msra.mxu0 0.0
    %148 = vmatpush.msra.mxu0 0.0
    %149 = vmatpush.msra.mxu0 0.0
    %150 = vmatpush.msra.mxu0 0.0
    %151 = vmatpush.msra.mxu0 0.0
    %152 = vmatpush.msra.mxu0 0.0
    %153 = vmatpush.msra.mxu0 0.0
    %154 = vmatpush.msra.mxu0 0.0
    %155 = vmatpush.msra.mxu0 %v103
    %156 = vmatmul.f32.gmra.mxu0 %v118
    %v157 = vpop.f32.mrf.mxu0
    %v158 = vadd.f32 %v109, %v157
    %159 = vdwg.mxu0
    %160 = vmatpush.msra.mxu0 0.0
    %161 = vmatpush.msra.mxu0 0.0
    %162 = vmatpush.msra.mxu0 0.0
    %163 = vmatpush.msra.mxu0 0.0
    %164 = vmatpush.msra.mxu0 0.0
    %165 = vmatpush.msra.mxu0 0.0
    %166 = vmatpush.msra.mxu0 0.0
    %167 = vmatpush.msra.mxu0 0.0
    %168 = vmatpush.msra.mxu0 0.0
    %169 = vmatpush.msra.mxu0 0.0
    %170 = vmatpush.msra.mxu0 0.0
    %171 = vmatpush.msra.mxu0 0.0
    %172 = vmatpush.msra.mxu0 0.0
    %173 = vmatpush.msra.mxu0 0.0
    %174 = vmatpush.msra.mxu0 0.0
    %175 = vmatpush.msra.mxu0 %v104
    %176 = vmatmul.f32.gmra.mxu0 %v118
    %v177 = vpop.f32.mrf.mxu0
    %v178 = vadd.f32 %v110, %v177
    %179 = vdwg.mxu0
    %180 = vmatpush.msra.mxu0 0.0
    %181 = vmatpush.msra.mxu0 0.0
    %182 = vmatpush.msra.mxu0 0.0
    %183 = vmatpush.msra.mxu0 0.0
    %184 = vmatpush.msra.mxu0 0.0
    %185 = vmatpush.msra.mxu0 0.0
    %186 = vmatpush.msra.mxu0 0.0
    %187 = vmatpush.msra.mxu0 0.0
    %188 = vmatpush.msra.mxu0 0.0
    %189 = vmatpush.msra.mxu0 0.0
    %190 = vmatpush.msra.mxu0 0.0
    %191 = vmatpush.msra.mxu0 0.0
    %192 = vmatpush.msra.mxu0 0.0
    %193 = vmatpush.msra.mxu0 0.0
    %194 = vmatpush.msra.mxu0 0.0
    %195 = vmatpush.msra.mxu0 %v105
    %196 = vmatmul.f32.gmra.mxu0 %v118
    %v197 = vpop.f32.mrf.mxu0
    %v198 = vadd.f32 %v111, %v197
    %199 = vdwg.mxu0
    %v200 = vmax.f32 %v138, 0.0
    %v201 = vmax.f32 %v158, 0.0
    %v202 = vmax.f32 %v178, 0.0
    %v203 = vmax.f32 %v198, 0.0
    %v204 = vld [vmem:[#allocation8] sm:$0xff]
    %v205 = vld [vmem:[#allocation8 + $0x8] sm:$0xff]
    %v206 = vld [vmem:[#allocation8 + $0x10] sm:$0xff]
    %v207 = vld [vmem:[#allocation8 + $0x18] sm:$0xff]
    %v208 = vld [vmem:[#allocation8 + $0x20] sm:$0xff]
    %v209 = vld [vmem:[#allocation8 + $0x28] sm:$0xff]
    %v210 = vld [vmem:[#allocation8 + $0x30] sm:$0xff]
    %v211 = vld [vmem:[#allocation8 + $0x38] sm:$0xff]
    %v212 = vld [vmem:[#allocation8 + $0x40] sm:$0xff]
    %v213 = vld [vmem:[#allocation8 + $0x48] sm:$0xff]
    %v214 = vld [vmem:[#allocation8 + $0x50] sm:$0xff]
    %v215 = vld [vmem:[#allocation8 + $0x58] sm:$0xff]
    %v216 = vld [vmem:[#allocation8 + $0x60] sm:$0xff]
    %v217 = vld [vmem:[#allocation8 + $0x68] sm:$0xff]
    %v218 = vld [vmem:[#allocation8 + $0x70] sm:$0xff]
    %v219 = vld [vmem:[#allocation8 + $0x78] sm:$0xff]
    %v220 = vld [vmem:[#allocation8 + $0x80] sm:$0xff]
    %v221 = vld [vmem:[#allocation8 + $0x88] sm:$0xff]
    %v222 = vld [vmem:[#allocation8 + $0x90] sm:$0xff]
    %v223 = vld [vmem:[#allocation8 + $0x98] sm:$0xff]
    %v224 = vld [vmem:[#allocation8 + $0xa0] sm:$0xff]
    %v225 = vld [vmem:[#allocation8 + $0xa8] sm:$0xff]
    %v226 = vld [vmem:[#allocation8 + $0xb0] sm:$0xff]
    %v227 = vld [vmem:[#allocation8 + $0xb8] sm:$0xff]
    %v228 = vld [vmem:[#allocation8 + $0xc0] sm:$0xff]
    %v229 = vld [vmem:[#allocation8 + $0xc8] sm:$0xff]
    %v230 = vld [vmem:[#allocation8 + $0xd0] sm:$0xff]
    %v231 = vld [vmem:[#allocation8 + $0xd8] sm:$0xff]
    %v232 = vld [vmem:[#allocation8 + $0xe0] sm:$0xff]
    %v233 = vld [vmem:[#allocation8 + $0xe8] sm:$0xff]
    %v234 = vld [vmem:[#allocation8 + $0xf0] sm:$0xff]
    %v235 = vld [vmem:[#allocation8 + $0xf8] sm:$0xff]
    %v236 = vld [vmem:[#allocation8 + $0x100] sm:$0xff]
    %v237 = vld [vmem:[#allocation8 + $0x108] sm:$0xff]
    %v238 = vld [vmem:[#allocation8 + $0x110] sm:$0xff]
    %v239 = vld [vmem:[#allocation8 + $0x118] sm:$0xff]
    %v240 = vld [vmem:[#allocation8 + $0x120] sm:$0xff]
    %v241 = vld [vmem:[#allocation8 + $0x128] sm:$0xff]
    %v242 = vld [vmem:[#allocation8 + $0x130] sm:$0xff]
    %v243 = vld [vmem:[#allocation8 + $0x138] sm:$0xff]
    %v244 = vld [vmem:[#allocation8 + $0x140] sm:$0xff]
    %v245 = vld [vmem:[#allocation8 + $0x148] sm:$0xff]
    %v246 = vld [vmem:[#allocation8 + $0x150] sm:$0xff]
    %v247 = vld [vmem:[#allocation8 + $0x158] sm:$0xff]
    %v248 = vld [vmem:[#allocation8 + $0x160] sm:$0xff]
    %v249 = vld [vmem:[#allocation8 + $0x168] sm:$0xff]
    %v250 = vld [vmem:[#allocation8 + $0x170] sm:$0xff]
    %v251 = vld [vmem:[#allocation8 + $0x178] sm:$0xff]
    %v252 = vld [vmem:[#allocation8 + $0x180] sm:$0xff]
    %v253 = vld [vmem:[#allocation8 + $0x188] sm:$0xff]
    %v254 = vld [vmem:[#allocation8 + $0x190] sm:$0xff]
    %v255 = vld [vmem:[#allocation8 + $0x198] sm:$0xff]
    %v256 = vld [vmem:[#allocation8 + $0x1a0] sm:$0xff]
    %v257 = vld [vmem:[#allocation8 + $0x1a8] sm:$0xff]
    %v258 = vld [vmem:[#allocation8 + $0x1b0] sm:$0xff]
    %v259 = vld [vmem:[#allocation8 + $0x1b8] sm:$0xff]
    %v260 = vld [vmem:[#allocation8 + $0x1c0] sm:$0xff]
    %v261 = vld [vmem:[#allocation8 + $0x1c8] sm:$0xff]
    %v262 = vld [vmem:[#allocation8 + $0x1d0] sm:$0xff]
    %v263 = vld [vmem:[#allocation8 + $0x1d8] sm:$0xff]
    %v264 = vld [vmem:[#allocation8 + $0x1e0] sm:$0xff]
    %v265 = vld [vmem:[#allocation8 + $0x1e8] sm:$0xff]
    %v266 = vld [vmem:[#allocation8 + $0x1f0] sm:$0xff]
    %v267 = vld [vmem:[#allocation8 + $0x1f8] sm:$0xff]
    %v268 = vunpack.c.l.bf16 %v204
    %v269 = vunpack.c.h.bf16 %v204
    %v270 = vunpack.c.l.bf16 %v205
    %v271 = vunpack.c.h.bf16 %v205
    %v272 = vunpack.c.l.bf16 %v206
    %v273 = vunpack.c.h.bf16 %v206
    %v274 = vunpack.c.l.bf16 %v207
    %v275 = vunpack.c.h.bf16 %v207
    %v276 = vunpack.c.l.bf16 %v208
    %v277 = vunpack.c.h.bf16 %v208
    %v278 = vunpack.c.l.bf16 %v209
    %v279 = vunpack.c.h.bf16 %v209
    %v280 = vunpack.c.l.bf16 %v210
    %v281 = vunpack.c.h.bf16 %v210
    %v282 = vunpack.c.l.bf16 %v211
    %v283 = vunpack.c.h.bf16 %v211
    %v284 = vunpack.c.l.bf16 %v212
    %v285 = vunpack.c.h.bf16 %v212
    %v286 = vunpack.c.l.bf16 %v213
    %v287 = vunpack.c.h.bf16 %v213
    %v288 = vunpack.c.l.bf16 %v214
    %v289 = vunpack.c.h.bf16 %v214
    %v290 = vunpack.c.l.bf16 %v215
    %v291 = vunpack.c.h.bf16 %v215
    %v292 = vunpack.c.l.bf16 %v216
    %v293 = vunpack.c.h.bf16 %v216
    %v294 = vunpack.c.l.bf16 %v217
    %v295 = vunpack.c.h.bf16 %v217
    %v296 = vunpack.c.l.bf16 %v218
    %v297 = vunpack.c.h.bf16 %v218
    %v298 = vunpack.c.l.bf16 %v219
    %v299 = vunpack.c.h.bf16 %v219
    %v300 = vunpack.c.l.bf16 %v220
    %v301 = vunpack.c.h.bf16 %v220
    %v302 = vunpack.c.l.bf16 %v221
    %v303 = vunpack.c.h.bf16 %v221
    %v304 = vunpack.c.l.bf16 %v222
    %v305 = vunpack.c.h.bf16 %v222
    %v306 = vunpack.c.l.bf16 %v223
    %v307 = vunpack.c.h.bf16 %v223
    %v308 = vunpack.c.l.bf16 %v224
    %v309 = vunpack.c.h.bf16 %v224
    %v310 = vunpack.c.l.bf16 %v225
    %v311 = vunpack.c.h.bf16 %v225
    %v312 = vunpack.c.l.bf16 %v226
    %v313 = vunpack.c.h.bf16 %v226
    %v314 = vunpack.c.l.bf16 %v227
    %v315 = vunpack.c.h.bf16 %v227
    %v316 = vunpack.c.l.bf16 %v228
    %v317 = vunpack.c.h.bf16 %v228
    %v318 = vunpack.c.l.bf16 %v229
    %v319 = vunpack.c.h.bf16 %v229
    %v320 = vunpack.c.l.bf16 %v230
    %v321 = vunpack.c.h.bf16 %v230
    %v322 = vunpack.c.l.bf16 %v231
    %v323 = vunpack.c.h.bf16 %v231
    %v324 = vunpack.c.l.bf16 %v232
    %v325 = vunpack.c.h.bf16 %v232
    %v326 = vunpack.c.l.bf16 %v233
    %v327 = vunpack.c.h.bf16 %v233
    %v328 = vunpack.c.l.bf16 %v234
    %v329 = vunpack.c.h.bf16 %v234
    %v330 = vunpack.c.l.bf16 %v235
    %v331 = vunpack.c.h.bf16 %v235
    %v332 = vunpack.c.l.bf16 %v236
    %v333 = vunpack.c.h.bf16 %v236
    %v334 = vunpack.c.l.bf16 %v237
    %v335 = vunpack.c.h.bf16 %v237
    %v336 = vunpack.c.l.bf16 %v238
    %v337 = vunpack.c.h.bf16 %v238
    %v338 = vunpack.c.l.bf16 %v239
    %v339 = vunpack.c.h.bf16 %v239
    %v340 = vunpack.c.l.bf16 %v240
    %v341 = vunpack.c.h.bf16 %v240
    %v342 = vunpack.c.l.bf16 %v241
    %v343 = vunpack.c.h.bf16 %v241
    %v344 = vunpack.c.l.bf16 %v242
    %v345 = vunpack.c.h.bf16 %v242
    %v346 = vunpack.c.l.bf16 %v243
    %v347 = vunpack.c.h.bf16 %v243
    %v348 = vunpack.c.l.bf16 %v244
    %v349 = vunpack.c.h.bf16 %v244
    %v350 = vunpack.c.l.bf16 %v245
    %v351 = vunpack.c.h.bf16 %v245
    %v352 = vunpack.c.l.bf16 %v246
    %v353 = vunpack.c.h.bf16 %v246
    %v354 = vunpack.c.l.bf16 %v247
    %v355 = vunpack.c.h.bf16 %v247
    %v356 = vunpack.c.l.bf16 %v248
    %v357 = vunpack.c.h.bf16 %v248
    %v358 = vunpack.c.l.bf16 %v249
    %v359 = vunpack.c.h.bf16 %v249
    %v360 = vunpack.c.l.bf16 %v250
    %v361 = vunpack.c.h.bf16 %v250
    %v362 = vunpack.c.l.bf16 %v251
    %v363 = vunpack.c.h.bf16 %v251
    %v364 = vunpack.c.l.bf16 %v252
    %v365 = vunpack.c.h.bf16 %v252
    %v366 = vunpack.c.l.bf16 %v253
    %v367 = vunpack.c.h.bf16 %v253
    %v368 = vunpack.c.l.bf16 %v254
    %v369 = vunpack.c.h.bf16 %v254
    %v370 = vunpack.c.l.bf16 %v255
    %v371 = vunpack.c.h.bf16 %v255
    %v372 = vunpack.c.l.bf16 %v256
    %v373 = vunpack.c.h.bf16 %v256
    %v374 = vunpack.c.l.bf16 %v257
    %v375 = vunpack.c.h.bf16 %v257
    %v376 = vunpack.c.l.bf16 %v258
    %v377 = vunpack.c.h.bf16 %v258
    %v378 = vunpack.c.l.bf16 %v259
    %v379 = vunpack.c.h.bf16 %v259
    %v380 = vunpack.c.l.bf16 %v260
    %v381 = vunpack.c.h.bf16 %v260
    %v382 = vunpack.c.l.bf16 %v261
    %v383 = vunpack.c.h.bf16 %v261
    %v384 = vunpack.c.l.bf16 %v262
    %v385 = vunpack.c.h.bf16 %v262
    %v386 = vunpack.c.l.bf16 %v263
    %v387 = vunpack.c.h.bf16 %v263
    %v388 = vunpack.c.l.bf16 %v264
    %v389 = vunpack.c.h.bf16 %v264
    %v390 = vunpack.c.l.bf16 %v265
    %v391 = vunpack.c.h.bf16 %v265
    %v392 = vunpack.c.l.bf16 %v266
    %v393 = vunpack.c.h.bf16 %v266
    %v394 = vunpack.c.l.bf16 %v267
    %v395 = vunpack.c.h.bf16 %v267
    %v396 = vld [vmem:[%s4] sm:$0x3]
    %v398 = vperm.slane %v396, 0
    %v399 = vperm.slane %v396, 1
    %402 = vmatpush.msra.mxu0 %v298
    %403 = vmatpush.msra.mxu0 %v296
    %404 = vmatpush.msra.mxu0 %v294
    %405 = vmatpush.msra.mxu0 %v292
    %406 = vmatpush.msra.mxu0 %v290
    %407 = vmatpush.msra.mxu0 %v288
    %408 = vmatpush.msra.mxu0 %v286
    %409 = vmatpush.msra.mxu0 %v284
    %410 = vmatpush.msra.mxu0 %v282
    %411 = vmatpush.msra.mxu0 %v280
    %412 = vmatpush.msra.mxu0 %v278
    %413 = vmatpush.msra.mxu0 %v276
    %414 = vmatpush.msra.mxu0 %v274
    %415 = vmatpush.msra.mxu0 %v272
    %416 = vmatpush.msra.mxu0 %v270
    %417 = vmatpush.msra.mxu0 %v268
    %418 = vmatmul.f32.gmra.mxu0 %v200
    %v419 = vpop.f32.mrf.mxu0
    %v420 = vadd.f32 %v398, %v419
    %421 = vdwg.mxu0
    %422 = vmatpush.msra.mxu0 %v330
    %423 = vmatpush.msra.mxu0 %v328
    %424 = vmatpush.msra.mxu0 %v326
    %425 = vmatpush.msra.mxu0 %v324
    %426 = vmatpush.msra.mxu0 %v322
    %427 = vmatpush.msra.mxu0 %v320
    %428 = vmatpush.msra.mxu0 %v318
    %429 = vmatpush.msra.mxu0 %v316
    %430 = vmatpush.msra.mxu0 %v314
    %431 = vmatpush.msra.mxu0 %v312
    %432 = vmatpush.msra.mxu0 %v310
    %433 = vmatpush.msra.mxu0 %v308
    %434 = vmatpush.msra.mxu0 %v306
    %435 = vmatpush.msra.mxu0 %v304
    %436 = vmatpush.msra.mxu0 %v302
    %437 = vmatpush.msra.mxu0 %v300
    %438 = vmatmul.f32.gmra.mxu0 %v201
    %v439 = vpop.f32.mrf.mxu0
    %v440 = vadd.f32 %v420, %v439
    %441 = vdwg.mxu0
    %442 = vmatpush.msra.mxu0 %v362
    %443 = vmatpush.msra.mxu0 %v360
    %444 = vmatpush.msra.mxu0 %v358
    %445 = vmatpush.msra.mxu0 %v356
    %446 = vmatpush.msra.mxu0 %v354
    %447 = vmatpush.msra.mxu0 %v352
    %448 = vmatpush.msra.mxu0 %v350
    %449 = vmatpush.msra.mxu0 %v348
    %450 = vmatpush.msra.mxu0 %v346
    %451 = vmatpush.msra.mxu0 %v344
    %452 = vmatpush.msra.mxu0 %v342
    %453 = vmatpush.msra.mxu0 %v340
    %454 = vmatpush.msra.mxu0 %v338
    %455 = vmatpush.msra.mxu0 %v336
    %456 = vmatpush.msra.mxu0 %v334
    %457 = vmatpush.msra.mxu0 %v332
    %458 = vmatmul.f32.gmra.mxu0 %v202
    %v459 = vpop.f32.mrf.mxu0
    %v460 = vadd.f32 %v440, %v459
    %461 = vdwg.mxu0
    %462 = vmatpush.msra.mxu0 %v394
    %463 = vmatpush.msra.mxu0 %v392
    %464 = vmatpush.msra.mxu0 %v390
    %465 = vmatpush.msra.mxu0 %v388
    %466 = vmatpush.msra.mxu0 %v386
    %467 = vmatpush.msra.mxu0 %v384
    %468 = vmatpush.msra.mxu0 %v382
    %469 = vmatpush.msra.mxu0 %v380
    %470 = vmatpush.msra.mxu0 %v378
    %471 = vmatpush.msra.mxu0 %v376
    %472 = vmatpush.msra.mxu0 %v374
    %473 = vmatpush.msra.mxu0 %v372
    %474 = vmatpush.msra.mxu0 %v370
    %475 = vmatpush.msra.mxu0 %v368
    %476 = vmatpush.msra.mxu0 %v366
    %477 = vmatpush.msra.mxu0 %v364
    %478 = vmatmul.f32.gmra.mxu0 %v203
    %v479 = vpop.f32.mrf.mxu0
    %v480 = vadd.f32 %v460, %v479
    %481 = vdwg.mxu0
    %482 = vmatpush.msra.mxu0 %v299
    %483 = vmatpush.msra.mxu0 %v297
    %484 = vmatpush.msra.mxu0 %v295
    %485 = vmatpush.msra.mxu0 %v293
    %486 = vmatpush.msra.mxu0 %v291
    %487 = vmatpush.msra.mxu0 %v289
    %488 = vmatpush.msra.mxu0 %v287
    %489 = vmatpush.msra.mxu0 %v285
    %490 = vmatpush.msra.mxu0 %v283
    %491 = vmatpush.msra.mxu0 %v281
    %492 = vmatpush.msra.mxu0 %v279
    %493 = vmatpush.msra.mxu0 %v277
    %494 = vmatpush.msra.mxu0 %v275
    %495 = vmatpush.msra.mxu0 %v273
    %496 = vmatpush.msra.mxu0 %v271
    %497 = vmatpush.msra.mxu0 %v269
    %498 = vmatmul.f32.gmra.mxu0 %v200
    %v499 = vpop.f32.mrf.mxu0
    %v500 = vadd.f32 %v399, %v499
    %501 = vdwg.mxu0
    %502 = vmatpush.msra.mxu0 %v331
    %503 = vmatpush.msra.mxu0 %v329
    %504 = vmatpush.msra.mxu0 %v327
    %505 = vmatpush.msra.mxu0 %v325
    %506 = vmatpush.msra.mxu0 %v323
    %507 = vmatpush.msra.mxu0 %v321
    %508 = vmatpush.msra.mxu0 %v319
    %509 = vmatpush.msra.mxu0 %v317
    %510 = vmatpush.msra.mxu0 %v315
    %511 = vmatpush.msra.mxu0 %v313
    %512 = vmatpush.msra.mxu0 %v311
    %513 = vmatpush.msra.mxu0 %v309
    %514 = vmatpush.msra.mxu0 %v307
    %515 = vmatpush.msra.mxu0 %v305
    %516 = vmatpush.msra.mxu0 %v303
    %517 = vmatpush.msra.mxu0 %v301
    %518 = vmatmul.f32.gmra.mxu0 %v201
    %v519 = vpop.f32.mrf.mxu0
    %v520 = vadd.f32 %v500, %v519
    %521 = vdwg.mxu0
    %522 = vmatpush.msra.mxu0 %v363
    %523 = vmatpush.msra.mxu0 %v361
    %524 = vmatpush.msra.mxu0 %v359
    %525 = vmatpush.msra.mxu0 %v357
    %526 = vmatpush.msra.mxu0 %v355
    %527 = vmatpush.msra.mxu0 %v353
    %528 = vmatpush.msra.mxu0 %v351
    %529 = vmatpush.msra.mxu0 %v349
    %530 = vmatpush.msra.mxu0 %v347
    %531 = vmatpush.msra.mxu0 %v345
    %532 = vmatpush.msra.mxu0 %v343
    %533 = vmatpush.msra.mxu0 %v341
    %534 = vmatpush.msra.mxu0 %v339
    %535 = vmatpush.msra.mxu0 %v337
    %536 = vmatpush.msra.mxu0 %v335
    %537 = vmatpush.msra.mxu0 %v333
    %538 = vmatmul.f32.gmra.mxu0 %v202
    %v539 = vpop.f32.mrf.mxu0
    %v540 = vadd.f32 %v520, %v539
    %541 = vdwg.mxu0
    %542 = vmatpush.msra.mxu0 %v395
    %543 = vmatpush.msra.mxu0 %v393
    %544 = vmatpush.msra.mxu0 %v391
    %545 = vmatpush.msra.mxu0 %v389
    %546 = vmatpush.msra.mxu0 %v387
    %547 = vmatpush.msra.mxu0 %v385
    %548 = vmatpush.msra.mxu0 %v383
    %549 = vmatpush.msra.mxu0 %v381
    %550 = vmatpush.msra.mxu0 %v379
    %551 = vmatpush.msra.mxu0 %v377
    %552 = vmatpush.msra.mxu0 %v375
    %553 = vmatpush.msra.mxu0 %v373
    %554 = vmatpush.msra.mxu0 %v371
    %555 = vmatpush.msra.mxu0 %v369
    %556 = vmatpush.msra.mxu0 %v367
    %557 = vmatpush.msra.mxu0 %v365
    %558 = vmatmul.f32.gmra.mxu0 %v203
    %v559 = vpop.f32.mrf.mxu0
    %v560 = vadd.f32 %v540, %v559
    %561 = vdwg.mxu0
    %v562 = vmax.f32 %v480, 0.0
    %v563 = vmax.f32 %v560, 0.0
    %v564 = vld [vmem:[#allocation10] sm:$0xf]
    %v565 = vld [vmem:[#allocation10 + $0x4] sm:$0xf]
    %v566 = vld [vmem:[#allocation10 + $0x8] sm:$0xf]
    %v567 = vld [vmem:[#allocation10 + $0xc] sm:$0xf]
    %v568 = vld [vmem:[#allocation10 + $0x10] sm:$0xf]
    %v569 = vld [vmem:[#allocation10 + $0x14] sm:$0xf]
    %v570 = vld [vmem:[#allocation10 + $0x18] sm:$0xf]
    %v571 = vld [vmem:[#allocation10 + $0x1c] sm:$0xf]
    %v572 = vld [vmem:[#allocation10 + $0x20] sm:$0xf]
    %v573 = vld [vmem:[#allocation10 + $0x24] sm:$0xf]
    %v574 = vld [vmem:[#allocation10 + $0x28] sm:$0xf]
    %v575 = vld [vmem:[#allocation10 + $0x2c] sm:$0xf]
    %v576 = vld [vmem:[#allocation10 + $0x30] sm:$0xf]
    %v577 = vld [vmem:[#allocation10 + $0x34] sm:$0xf]
    %v578 = vld [vmem:[#allocation10 + $0x38] sm:$0xf]
    %v579 = vld [vmem:[#allocation10 + $0x3c] sm:$0xf]
    %v580 = vld [vmem:[#allocation10 + $0x40] sm:$0xf]
    %v581 = vld [vmem:[#allocation10 + $0x44] sm:$0xf]
    %v582 = vld [vmem:[#allocation10 + $0x48] sm:$0xf]
    %v583 = vld [vmem:[#allocation10 + $0x4c] sm:$0xf]
    %v584 = vld [vmem:[#allocation10 + $0x50] sm:$0xf]
    %v585 = vld [vmem:[#allocation10 + $0x54] sm:$0xf]
    %v586 = vld [vmem:[#allocation10 + $0x58] sm:$0xf]
    %v587 = vld [vmem:[#allocation10 + $0x5c] sm:$0xf]
    %v588 = vld [vmem:[#allocation10 + $0x60] sm:$0xf]
    %v589 = vld [vmem:[#allocation10 + $0x64] sm:$0xf]
    %v590 = vld [vmem:[#allocation10 + $0x68] sm:$0xf]
    %v591 = vld [vmem:[#allocation10 + $0x6c] sm:$0xf]
    %v592 = vld [vmem:[#allocation10 + $0x70] sm:$0xf]
    %v593 = vld [vmem:[#allocation10 + $0x74] sm:$0xf]
    %v594 = vld [vmem:[#allocation10 + $0x78] sm:$0xf]
    %v595 = vld [vmem:[#allocation10 + $0x7c] sm:$0xf]
    %v596 = vunpack.c.l.bf16 %v564
    %v597 = vunpack.c.l.bf16 %v565
    %v598 = vunpack.c.l.bf16 %v566
    %v599 = vunpack.c.l.bf16 %v567
    %v600 = vunpack.c.l.bf16 %v568
    %v601 = vunpack.c.l.bf16 %v569
    %v602 = vunpack.c.l.bf16 %v570
    %v603 = vunpack.c.l.bf16 %v571
    %v604 = vunpack.c.l.bf16 %v572
    %v605 = vunpack.c.l.bf16 %v573
    %v606 = vunpack.c.l.bf16 %v574
    %v607 = vunpack.c.l.bf16 %v575
    %v608 = vunpack.c.l.bf16 %v576
    %v609 = vunpack.c.l.bf16 %v577
    %v610 = vunpack.c.l.bf16 %v578
    %v611 = vunpack.c.l.bf16 %v579
    %v612 = vunpack.c.l.bf16 %v580
    %v613 = vunpack.c.l.bf16 %v581
    %v614 = vunpack.c.l.bf16 %v582
    %v615 = vunpack.c.l.bf16 %v583
    %v616 = vunpack.c.l.bf16 %v584
    %v617 = vunpack.c.l.bf16 %v585
    %v618 = vunpack.c.l.bf16 %v586
    %v619 = vunpack.c.l.bf16 %v587
    %v620 = vunpack.c.l.bf16 %v588
    %v621 = vunpack.c.l.bf16 %v589
    %v622 = vunpack.c.l.bf16 %v590
    %v623 = vunpack.c.l.bf16 %v591
    %v624 = vunpack.c.l.bf16 %v592
    %v625 = vunpack.c.l.bf16 %v593
    %v626 = vunpack.c.l.bf16 %v594
    %v627 = vunpack.c.l.bf16 %v595
    %v628 = vld [vmem:[%s6] sm:$0x1]
    %v630 = vperm.slane %v628, 0
    %632 = vmatpush.msra.mxu0 %v611
    %633 = vmatpush.msra.mxu0 %v610
    %634 = vmatpush.msra.mxu0 %v609
    %635 = vmatpush.msra.mxu0 %v608
    %636 = vmatpush.msra.mxu0 %v607
    %637 = vmatpush.msra.mxu0 %v606
    %638 = vmatpush.msra.mxu0 %v605
    %639 = vmatpush.msra.mxu0 %v604
    %640 = vmatpush.msra.mxu0 %v603
    %641 = vmatpush.msra.mxu0 %v602
    %642 = vmatpush.msra.mxu0 %v601
    %643 = vmatpush.msra.mxu0 %v600
    %644 = vmatpush.msra.mxu0 %v599
    %645 = vmatpush.msra.mxu0 %v598
    %646 = vmatpush.msra.mxu0 %v597
    %647 = vmatpush.msra.mxu0 %v596
    %648 = vmatmul.f32.gmra.mxu0 %v562
    %v649 = vpop.f32.mrf.mxu0
    %v650 = vadd.f32 %v630, %v649
    %651 = vdwg.mxu0
    %652 = vmatpush.msra.mxu0 %v627
    %653 = vmatpush.msra.mxu0 %v626
    %654 = vmatpush.msra.mxu0 %v625
    %655 = vmatpush.msra.mxu0 %v624
    %656 = vmatpush.msra.mxu0 %v623
    %657 = vmatpush.msra.mxu0 %v622
    %658 = vmatpush.msra.mxu0 %v621
    %659 = vmatpush.msra.mxu0 %v620
    %660 = vmatpush.msra.mxu0 %v619
    %661 = vmatpush.msra.mxu0 %v618
    %662 = vmatpush.msra.mxu0 %v617
    %663 = vmatpush.msra.mxu0 %v616
    %664 = vmatpush.msra.mxu0 %v615
    %665 = vmatpush.msra.mxu0 %v614
    %666 = vmatpush.msra.mxu0 %v613
    %667 = vmatpush.msra.mxu0 %v612
    %668 = vmatmul.f32.gmra.mxu0 %v563
    %v669 = vpop.f32.mrf.mxu0
    %v670 = vadd.f32 %v650, %v669
    %671 = vdwg.mxu0
    %672 = vst [vmem:[#allocation11] sm:$0xff] %v670
    // Predicated region
    $region50: #{tpu_custom_call.1} parent=1 // pred_check
      _
    $region51: #{tpu_custom_call.1} parent=1 // pred_check_branch
      %674 = sbr.rel (0) target = $region53
    $region52: #{tpu_custom_call.1} parent=1 // pred_region
      %676 = vsyncadd [#allocation4], 0
      %s678 = sshll.u32 [#allocation11], 4
      %s679 = int_to_ptr.vmem [resolvable:$true] %s678
      %s680 = sshll.u32 %s7, 4
      %s681 = int_to_ptr.hbm [resolvable:$true] %s680
      %683 = dma.vmem_to_hbm [thread:$0]  %s679, 128, %s681, [#allocation4]
    $region53: #{tpu_custom_call.1} parent=1 // pred_fallthru
      _
    // Predicated region
    $region54: #{tpu_custom_call.1} parent=1 // pred_check
      _
    $region55: #{tpu_custom_call.1} parent=1 // pred_check_branch
      %685 = sbr.rel (0) target = $region57
    $region56: #{tpu_custom_call.1} parent=1 // pred_region
      %687 = dma.done [#allocation4], 128
    $region57: #{tpu_custom_call.1} parent=1 // pred_fallthru
      _
    %688 = vsyncpa [#allocation3], 1
    %689 = vsyncpa [#allocation6], 1
    %690 = vsyncpa [#allocation9], 1
    %691 = vsyncpa [#allocation4], 1

</llo_original>
